<compile_context>
chip_gen: v6e
topology: v6e:2x2x1
jax: 0.10.0
libtpu: 0.0.40
codegen_flags: <defaults>
</compile_context>

<pallas_src>
from itertools import chain, combinations_with_replacement

import numpy as np
import jax
import jax.numpy as jnp
from jax.experimental import pallas as pl
from jax.experimental.pallas import tpu as pltpu


def _round_up(a: int, m: int) -> int:
    return ((a + m - 1) // m) * m


# ----------------------------------------------------------------------------
# Host-side construction of the polynomial powers matrix (mirrors __init__).
# ----------------------------------------------------------------------------
def build_powers(dim: int, degree: int, include_bias: bool = True) -> np.ndarray:
    start = int(not include_bias)
    combs = chain.from_iterable(
        combinations_with_replacement(range(dim), i) for i in range(start, degree + 1)
    )
    return np.vstack([np.bincount(c, minlength=dim) for c in combs]).astype(np.int32)


# ----------------------------------------------------------------------------
# Compile-time feature builder shared by both kernels.
#   x:    (dim, TB) f32, batch on the 128-lane axis
#   out:  (num_features, TB) f32 -- every degree-k monomial is ONE multiply of a
#         live degree-(k-1) monomial by x_d (never read back from out_ref).
# ----------------------------------------------------------------------------
def _make_feature_builder(dim: int, degree: int, include_bias: bool = True):
    combos = {k: list(combinations_with_replacement(range(dim), k))
              for k in range(degree + 1)}
    sizes = {k: len(combos[k]) for k in combos}
    num_features = sum(sizes[k] for k in range((0 if include_bias else 1), degree + 1))

    # starts[(k, d)]: first index inside the degree-k block whose smallest variable
    # is >= d; degree-(k+1) monomials with leading variable d are x_d * that suffix.
    starts = {}
    for k in range(1, degree):
        lst = combos[k]
        for d in range(dim):
            s = 0
            while s < len(lst) and lst[s][0] < d:
                s += 1
            starts[(k, d)] = s

    def build(x):                                    # x: (dim, TB) float32
        tb = x.shape[1]
        rows = []
        if include_bias:
            rows.append(jnp.ones((1, tb), jnp.float32))
        if degree >= 1:
            rows.append(x)
        prev = x                                     # degree-1 block, live f32
        for k in range(2, degree + 1):
            blocks = []
            for d in range(dim):
                s = starts[(k - 1, d)]
                if s >= sizes[k - 1]:
                    continue
                blocks.append(x[d:d + 1, :] * prev[s:, :])   # 1 mul / element
            prev = jnp.concatenate(blocks, axis=0)   # degree-k block, stays f32
            rows.append(prev)
        return jnp.concatenate(rows, axis=0) if len(rows) > 1 else rows[0]

    return build, num_features


# ----------------------------------------------------------------------------
# Kernel 1: standalone polynomial features (SparseFeaturesLibrary.forward),
# lane-dense (num_features x batch) layout, ONE full-tile store per grid step.
# ----------------------------------------------------------------------------
def _make_poly_kernel(dim: int, degree: int, include_bias: bool = True):
    build, num_features = _make_feature_builder(dim, degree, include_bias)

    def kernel(x_ref, out_ref):
        out_ref[...] = build(x_ref[...].astype(jnp.float32)).astype(out_ref.dtype)

    return kernel, num_features


def sparse_polynomial_features(x: jax.Array,
                               degree: int,
                               *,
                               include_bias: bool = True,
                               sparse_index=None,
                               max_lane_tile: int = 8192,
                               out_dtype=jnp.float32) -> jax.Array:
    """Polynomial features of x (..., dim) -> (..., num_features)."""
    dim = x.shape[-1]
    kernel, num_features = _make_poly_kernel(dim, degree, include_bias)

    lead = x.shape[:-1]
    b = int(np.prod(lead)) if lead else 1
    x2 = x.reshape(b, dim)

    # ---- lane-tile selection (batch lives on the 128-lane axis) ----
    per_lane_bytes = (num_features + dim) * 4 * 2        # f32 in+out blocks, double-buffered
    budget = 24 * 1024 * 1024
    cap = max(128, min(int(max_lane_tile), budget // per_lane_bytes, _round_up(b, 128)))
    cap = (cap // 128) * 128
    steps = -(-b // cap)
    if steps > 1 and steps % 2 == 1:
        steps += 1                                       # even split for v7x's 2 TensorCores
    lane_tile = max(128, _round_up(-(-b // steps), 128))
    b_pad = steps * lane_tile

    xT = jnp.transpose(x2.astype(jnp.float32))           # (dim, b) -- layout plumbing
    if b_pad != b:
        xT = jnp.pad(xT, ((0, 0), (0, b_pad - b)))

    need = lane_tile * per_lane_bytes + (4 << 20)
    vmem_limit = int(min(max(need, 32 << 20), 48 << 20))

    outT = pl.pallas_call(
        kernel,
        out_shape=jax.ShapeDtypeStruct((num_features, b_pad), out_dtype),
        grid_spec=pltpu.PrefetchScalarGridSpec(
            num_scalar_prefetch=0,
            grid=(steps,),
            in_specs=[pl.BlockSpec((dim, lane_tile), lambda i: (0, i))],
            out_specs=pl.BlockSpec((num_features, lane_tile), lambda i: (0, i)),
        ),
        compiler_params=pltpu.CompilerParams(
            dimension_semantics=("parallel",),
            vmem_limit_bytes=vmem_limit,
        ),
    )(xT)

    out = jnp.transpose(outT[:, :b])                      # drop padded lanes -> (b, F)
    if sparse_index is not None:
        out = out[:, jnp.asarray(sparse_index)]
    return out.reshape(*lead, -1) if lead else out.reshape(-1)


# ----------------------------------------------------------------------------
# Kernel 2: FUSED SparseGLMGaussianLikelihood.forward
#   phi^T built live in VMEM, then
#     mu^T = w_mean @ phi^T                       (1, B)  lane-dense
#     cov  = phi @ Cw @ phi^T + var * I           (B, B)
#   with Cw = (w - w_mean)^T (w - w_mean) / (n - 1) precomputed host-side.
# ----------------------------------------------------------------------------
def _make_fused_glm_kernel(dim: int, degree: int, include_bias: bool = True):
    build, num_features = _make_feature_builder(dim, degree, include_bias)

    def kernel(var_ref, xT_ref, wmean_ref, cw_ref, mu_ref, cov_ref):
        phiT = build(xT_ref[...].astype(jnp.float32))                     # (F, Bp) live
        wm = wmean_ref[...].astype(jnp.float32)                           # (1, F)
        cw = cw_ref[...].astype(jnp.float32)                              # (F, F)

        mu_ref[...] = jax.lax.dot_general(                                # (1, Bp)
            wm, phiT, (((1,), (0,)), ((), ())),
            preferred_element_type=jnp.float32)

        t = jax.lax.dot_general(                                          # (F, Bp)
            cw, phiT, (((1,), (0,)), ((), ())),
            preferred_element_type=jnp.float32)
        phi = phiT.T                                                      # (Bp, F)
        cov = jax.lax.dot_general(                                        # (Bp, Bp)
            phi, t, (((1,), (0,)), ((), ())),
            preferred_element_type=jnp.float32)

        bp = cov.shape[0]
        row = jax.lax.broadcasted_iota(jnp.int32, (bp, bp), 0)
        col = jax.lax.broadcasted_iota(jnp.int32, (bp, bp), 1)
        cov_ref[...] = cov + var_ref[0] * (row == col).astype(jnp.float32)

    return kernel, num_features


def sparse_glm_gaussian_forward(x, w, invsoftplus_sigma, degree, *, include_bias=True):
    """SparseGLMGaussianLikelihood.forward(x): returns (mu, cov).

    w: (n, num_features) reparameterized weight samples.
    # TODO(synk): SVIHalfCauchyPrior (get_reparam_weights / kl_divergence / sparse-index
    # pruning / optimize loop) is not part of the provided spec; sampled weights are an
    # explicit input instead of being drawn inside the module.
    """
    x = jnp.asarray(x)
    w = jnp.asarray(w)
    assert x.ndim == 2, "GLM head expects x of shape (batch, dim)"
    b, dim = x.shape
    n, f_w = w.shape
    assert n >= 2, "cov divides by (n - 1); need at least 2 reparameterization samples"

    kernel, num_features = _make_fused_glm_kernel(dim, degree, include_bias)
    assert f_w == num_features, (f_w, num_features)
    F = num_features

    # ---- host-side moment precompute: contraction over n happens once, outside ----
    w32 = w.astype(jnp.float32)
    w_mean = jnp.mean(w32, axis=0, keepdims=True)                         # (1, F)
    wc = w32 - w_mean
    cw = jax.lax.dot_general(wc, wc, (((0,), (0,)), ((), ())),
                             precision=jax.lax.Precision.HIGHEST) / (n - 1)   # (F, F)

    # Scalar noise variance, fed through SMEM.
    # TODO(synk): a per-output noise vector would need diag(var) instead of var[0] * I.
    sig = jnp.asarray(invsoftplus_sigma, jnp.float32).reshape(-1)[0]
    var = (jax.nn.softplus(sig) ** 2).reshape(1)

    b_pad = _round_up(b, 128)
    xT = jnp.transpose(x.astype(jnp.float32))
    if b_pad != b:
        xT = jnp.pad(xT, ((0, 0), (0, b_pad - b)))

    need = 4 * (2 * dim * b_pad + 2 * F + 2 * F * F + 2 * b_pad
                + 2 * b_pad * b_pad + 2 * F * b_pad) + (4 << 20)
    vmem_limit = int(min(max(need, 32 << 20), 48 << 20))
    # TODO(synk): for very large batches (cov is b^2 f32) this single-block head should be
    # tiled over (B_i, B_j) cov blocks; the module's dense batch covariance keeps b moderate.

    mu, cov = pl.pallas_call(
        kernel,
        out_shape=(jax.ShapeDtypeStruct((1, b_pad), jnp.float32),
                   jax.ShapeDtypeStruct((b_pad, b_pad), jnp.float32)),
        grid_spec=pltpu.PrefetchScalarGridSpec(
            num_scalar_prefetch=0,
            grid=(1,),
            in_specs=[pl.BlockSpec(memory_space=pltpu.MemorySpace.SMEM),    # var (scalar)
                      pl.BlockSpec((dim, b_pad), lambda i: (0, 0)),         # x^T
                      pl.BlockSpec((1, F), lambda i: (0, 0)),               # w_mean
                      pl.BlockSpec((F, F), lambda i: (0, 0))],              # Cw
            out_specs=[pl.BlockSpec((1, b_pad), lambda i: (0, 0)),          # mu (lane-dense)
                       pl.BlockSpec((b_pad, b_pad), lambda i: (0, 0))],     # cov
        ),
        compiler_params=pltpu.CompilerParams(
            dimension_semantics=("arbitrary",),
            vmem_limit_bytes=vmem_limit,
        ),
    )(var, xT, w_mean, cw)
    return mu[0, :b], cov[:b, :b]


# ----------------------------------------------------------------------------
# Pure-JAX references for verification.
# ----------------------------------------------------------------------------
def reference_poly(x, powers):
    x = x.astype(jnp.float32)
    feats = []
    for row in np.asarray(powers):
        f = jnp.ones(x.shape[:-1], jnp.float32)
        for d, p in enumerate(row):
            for _ in range(int(p)):
                f = f * x[..., d]
        feats.append(f)
    return jnp.stack(feats, axis=-1)


if __name__ == "__main__":
    key = jax.random.PRNGKey(0)
    k1, k2, k3, k4 = jax.random.split(key, 4)

    # ---- feature library (polynomial features) checks ----
    dim, degree = 4, 2
    powers = build_powers(dim, degree, True)                       # (15, 4)

    xa = jax.random.normal(k1, (2, 8, dim), dtype=jnp.float32)
    fa = jax.block_until_ready(sparse_polynomial_features(xa, degree))
    assert fa.shape == (2, 8, powers.shape[0]), fa.shape
    assert jnp.allclose(fa, reference_poly(xa, powers), atol=1e-5, rtol=1e-5)

    # larger batch: exercises padded-lane slicing
    xb = jax.random.normal(k2, (600, dim), dtype=jnp.float32)
    fb = jax.block_until_ready(sparse_polynomial_features(xb, degree))
    assert fb.shape == (600, powers.shape[0]), fb.shape
    assert jnp.allclose(fb, reference_poly(xb, powers), atol=1e-5, rtol=1e-5)

    # degree-3: exercises the generic incremental higher-degree path
    dim3, deg3 = 3, 3
    powers3 = build_powers(dim3, deg3, True)                       # (20, 3)
    xc = jax.random.normal(k3, (2, 8, dim3), dtype=jnp.float32)
    fc = jax.block_until_ready(sparse_polynomial_features(xc, deg3))
    assert fc.shape == (2, 8, powers3.shape[0]), fc.shape
    assert jnp.allclose(fc, reference_poly(xc, powers3), atol=1e-5, rtol=1e-5)

    # ---- fused SparseGLMGaussianLikelihood.forward (mu, cov) ----
    B, n_reparam = 16, 256
    xg = jax.random.normal(k4, (B, dim), dtype=jnp.float32)
    F = powers.shape[0]
    w = 0.1 * jax.random.normal(jax.random.PRNGKey(1), (n_reparam, F), dtype=jnp.float32)
    invsp_sigma = jnp.asarray([float(np.log(np.expm1(1e-3)))], jnp.float32)  # noise=1e-3

    mu, cov = sparse_glm_gaussian_forward(xg, w, invsp_sigma, degree)
    mu, cov = jax.block_until_ready((mu, cov))

    # Reference follows the original (contract-over-n) formulation.
    phi_ref = reference_poly(xg, powers)
    y_ref = jnp.einsum("bf,nf->nb", phi_ref, w, precision=jax.lax.Precision.HIGHEST)
    mu_ref = y_ref.mean(0)
    c_ref = y_ref - mu_ref
    var_ref = jax.nn.softplus(invsp_sigma[0]) ** 2
    cov_ref = (jnp.einsum("nb,nc->bc", c_ref, c_ref, precision=jax.lax.Precision.HIGHEST)
               / (n_reparam - 1) + var_ref * jnp.eye(B, dtype=jnp.float32))

    assert mu.shape == (B,) and cov.shape == (B, B), (mu.shape, cov.shape)
    assert jnp.allclose(mu, mu_ref, atol=1e-3, rtol=1e-3)
    assert jnp.allclose(cov, cov_ref, atol=1e-3, rtol=1e-3)

    print("KERNEL_OK")
</pallas_src>

<mosaic_0001>
module attributes {stable_mosaic.version = 11 : i64} {
  func.func @kernel(%arg0: i32, %arg1: memref<4x128xf32, #tpu.memory_space<vmem>>, %arg2: memref<15x128xf32, #tpu.memory_space<vmem>>) attributes {dimension_semantics = [#tpu.dimension_semantics<parallel>], iteration_bounds = array<i64: 1>, scalar_prefetch = 0 : i64, scratch_operands = 0 : i64, tpu.core_type = #tpu.core_type<tc>, window_params = [{transform_indices = @transform_0, window_bounds = array<i64: 4, 128>}, {transform_indices = @transform_1, window_bounds = array<i64: 15, 128>}]} {
    %c0 = arith.constant 0 : index
    %c0_0 = arith.constant 0 : index
    %0 = vector.load %arg1[%c0, %c0_0] : memref<4x128xf32, #tpu.memory_space<vmem>>, vector<4x128xf32>
    %cst = arith.constant 1.000000e+00 : f32
    %1 = vector.broadcast %cst : f32 to vector<1x128xf32>
    %2 = vector.extract_strided_slice %0 {offsets = [0, 0], sizes = [1, 128], strides = [1, 1]} : vector<4x128xf32> to vector<1x128xf32>
    %3 = vector.broadcast %2 : vector<1x128xf32> to vector<4x128xf32>
    %4 = arith.mulf %3, %0 : vector<4x128xf32>
    %5 = vector.extract_strided_slice %0 {offsets = [1, 0], sizes = [1, 128], strides = [1, 1]} : vector<4x128xf32> to vector<1x128xf32>
    %6 = vector.extract_strided_slice %0 {offsets = [1, 0], sizes = [3, 128], strides = [1, 1]} : vector<4x128xf32> to vector<3x128xf32>
    %7 = vector.broadcast %5 : vector<1x128xf32> to vector<3x128xf32>
    %8 = arith.mulf %7, %6 : vector<3x128xf32>
    %9 = vector.extract_strided_slice %0 {offsets = [2, 0], sizes = [1, 128], strides = [1, 1]} : vector<4x128xf32> to vector<1x128xf32>
    %10 = vector.extract_strided_slice %0 {offsets = [2, 0], sizes = [2, 128], strides = [1, 1]} : vector<4x128xf32> to vector<2x128xf32>
    %11 = vector.broadcast %9 : vector<1x128xf32> to vector<2x128xf32>
    %12 = arith.mulf %11, %10 : vector<2x128xf32>
    %13 = vector.extract_strided_slice %0 {offsets = [3, 0], sizes = [1, 128], strides = [1, 1]} : vector<4x128xf32> to vector<1x128xf32>
    %14 = vector.extract_strided_slice %0 {offsets = [3, 0], sizes = [1, 128], strides = [1, 1]} : vector<4x128xf32> to vector<1x128xf32>
    %15 = arith.mulf %13, %14 : vector<1x128xf32>
    %16 = tpu.concatenate %4, %8, %12, %15 in 0 : vector<4x128xf32>, vector<3x128xf32>, vector<2x128xf32>, vector<1x128xf32> -> vector<10x128xf32>
    %17 = tpu.concatenate %1, %0, %16 in 0 : vector<1x128xf32>, vector<4x128xf32>, vector<10x128xf32> -> vector<15x128xf32>
    %c0_1 = arith.constant 0 : index
    %c0_2 = arith.constant 0 : index
    %18 = vector.load %arg2[%c0_1, %c0_2] : memref<15x128xf32, #tpu.memory_space<vmem>>, vector<15x128xf32>
    tpu.vector_store %arg2[%c0_1, %c0_2], %17 {strides = array<i32>} : memref<15x128xf32, #tpu.memory_space<vmem>>, vector<15x128xf32>,
    return
  }
  func.func @transform_0(%arg0: i32) -> (i32, i32) {
    %c0_i32 = arith.constant 0 : i32
    %c0_i32_0 = arith.constant 0 : i32
    return %c0_i32, %arg0 : i32, i32
  }
  func.func @transform_1(%arg0: i32) -> (i32, i32) {
    %c0_i32 = arith.constant 0 : i32
    %c0_i32_0 = arith.constant 0 : i32
    return %c0_i32, %arg0 : i32, i32
  }
}

</mosaic_0001>

<llo_original>
// kernel: tpu_custom_call.1
$region0: #{tpu_custom_call.1}
  #allocation0 [shape = 'u32[]', space=smem, size = 0x4, offset = 0x4, fixed_abs, tag = 'smem constant byte address 0x4 - core index']
  #allocation1 [shape = 'u32[144,128]{1,0:T(1,128)}', space=vmem, size = 0x12000, scoped, tag = 'internal scratch']
  %s0 = inlined_call_operand.hbm [shape: f32[4,128], index: 0, kind: input, shape index: {}]
  %s1 = inlined_call_operand.hbm [shape: f32[15,128], index: 1, kind: output, shape index: {}]
  %s2 = sld [smem:[#allocation0]]
  $region18: #{tpu_custom_call.1} parent=0
    _
  %s4 = ssub.s32 1, %s2
  %s5 = scalar_select 0, %s4, %s2
  $region1: #{tpu_custom_call.1} parent=0
    #allocation2 [shape = 'u8[2048]{0}', space=vmem, size = 0x800, scoped, tag = 'input window, operand 0, single buffered']
    #allocation3 [shape = 's32[1]{0}', space=sflag, size = 0x4, scoped, tag = 'scoped memory for tpu_custom_call.1']
    #allocation4 [shape = 's32[1]{0}', space=sflag, size = 0x4, scoped, tag = 'scoped memory for tpu_custom_call.1']
    #allocation5 [shape = 'u8[8192]{0}', space=vmem, size = 0x2000, scoped, tag = 'output window, operand 0, single buffered']
    %6 = vsyncpa [#allocation3], 0
    %7 = vsyncpa [#allocation4], 0
    // Predicated region
    $region2: #{tpu_custom_call.1} parent=1 // pred_check
      _
    $region3: #{tpu_custom_call.1} parent=1 // pred_check_branch
      %9 = sbr.rel (0) target = $region5
    $region4: #{tpu_custom_call.1} parent=1 // pred_region
      %s11 = ssub.s32 64, 64
      %12 = vsyncadd [#allocation3], %s11
      %s14 = sshll.u32 [#allocation2], 4
      %s15 = int_to_ptr.vmem [resolvable:$true] %s14
      %17 = dma.hbm_to_vmem [thread:$0]  %s0, 64, %s15, [#allocation3]
    $region5: #{tpu_custom_call.1} parent=1 // pred_fallthru
      _
    // Predicated region
    $region6: #{tpu_custom_call.1} parent=1 // pred_check
      _
    $region7: #{tpu_custom_call.1} parent=1 // pred_check_branch
      %19 = sbr.rel (0) target = $region9
    $region8: #{tpu_custom_call.1} parent=1 // pred_region
      %20 = dma.done [#allocation3], 64
    $region9: #{tpu_custom_call.1} parent=1 // pred_fallthru
      _
    %v21 = vld [vmem:[#allocation2] sm:$0xf]
    %v22 = vlaneseq
    %v23 = vshrl.u32 %v22, 7
    %v24 = vsub.s32 0, %v23
    %v25 = vrot.slane %v21, %v24
    %v26 = vmul.f32 %v25, %v21
    %v27 = vlaneseq
    %v28 = vshrl.u32 %v27, 7
    %v29 = vsub.s32 1, %v28
    %v30 = vrot.slane %v21, %v29
    %v31 = vmul.f32 %v30, %v21
    %v32 = vlaneseq
    %v33 = vshrl.u32 %v32, 7
    %v34 = vsub.s32 2, %v33
    %v35 = vrot.slane %v21, %v34
    %v36 = vmul.f32 %v35, %v21
    %v37 = vmul.f32 %v21, %v21
    %v39 = vrot.slane %v31, 5
    %v42 = vrot.slane %v36, 3
    %v45 = vrot.slane %v37, 2
    %vm47 = vcmask 1043456
    %v48 = vsel %vm47, %v26, %v39
    %vm49 = vcmask 1046528
    %v50 = vsel %vm49, %v48, %v42
    %vm51 = vcmask 1040384
    %v52 = vsel %vm51, %v42, %v45
    %v54 = vrot.slane %v21, 7
    %vm58 = vcmask 1044480
    %v59 = vrot.slane %v50, 3
    %v60 = vrot.slane %v52, 3
    %v61 = vsel %vm58, %v59, %v60
    %v64 = vsel %vm51, 1.0, %v54
    %v65 = vsel %vm58, %v64, %v59
    %66 = vst [vmem:[#allocation5] sm:$0xff] %v65
    %67 = vst [vmem:[#allocation5 + $0x8] sm:$0x7f] %v61
    // Predicated region
    $region10: #{tpu_custom_call.1} parent=1 // pred_check
      _
    $region11: #{tpu_custom_call.1} parent=1 // pred_check_branch
      %69 = sbr.rel (0) target = $region13
    $region12: #{tpu_custom_call.1} parent=1 // pred_region
      %s71 = ssub.s32 256, 256
      %72 = vsyncadd [#allocation4], %s71
      %s73 = sshll.u32 [#allocation5], 4
      %s74 = int_to_ptr.vmem [resolvable:$true] %s73
      %79 = dma.vmem_to_hbm [thread:$0]  %s74, 256, %s1, [#allocation4], 128, 128, 8
    $region13: #{tpu_custom_call.1} parent=1 // pred_fallthru
      _
    // Predicated region
    $region14: #{tpu_custom_call.1} parent=1 // pred_check
      _
    $region15: #{tpu_custom_call.1} parent=1 // pred_check_branch
      %81 = sbr.rel (0) target = $region17
    $region16: #{tpu_custom_call.1} parent=1 // pred_region
      %82 = dma.done [#allocation4], 256
    $region17: #{tpu_custom_call.1} parent=1 // pred_fallthru
      _
    %83 = vsyncpa [#allocation3], 1
    %84 = vsyncpa [#allocation4], 1

</llo_original>
